<compile_context>
chip_gen: v6e
topology: v6e:2x2x1
jax: 0.10.0
libtpu: 0.0.40
codegen_flags: <defaults>
</compile_context>

<pallas_src>
import functools

import jax
import jax.numpy as jnp
from jax.experimental import pallas as pl
from jax.experimental.pallas import tpu as pltpu

# --- loss hyper-parameters (mmdet defaults used by TransFusion) ---
FOCAL_ALPHA = 0.25      # FocalLoss(use_sigmoid=True)
FOCAL_GAMMA = 2.0       # implemented as pt * pt
HM_ALPHA = 2.0          # GaussianFocalLoss, implemented as squares
HM_GAMMA = 4.0          # implemented as square-of-square
L1_WEIGHT = 0.25
EPS = 1e-12


def set_criterion_kernel(dense_ref, gt_ref, hm_ref, labels_ref, boxp_ref,
                         boxt_ref, out_ref, *, p_real, hw_real):
    """Grid axis 0 tiles the dense-heatmap spatial (H*W) axis.

    out_ref (SMEM, f32[8]) accumulates:
      [0] heatmap-loss numerator   [1] #(gt == 1)
      [2] focal cls-loss sum       [3] center |d| sum
      [4] dim |d| sum              [5] rot |d| sum
      [6] #assigned proposals      [7] unused
    """
    i = pl.program_id(0)
    hw_tile = dense_ref.shape[-1]
    num_classes = hm_ref.shape[1]

    # ------------------------------------------------------------------
    # dense gaussian-focal heatmap partial sums (every grid step)
    # ------------------------------------------------------------------
    x = dense_ref[...].astype(jnp.float32)                    # (B, C, T) logits
    gt = gt_ref[...].astype(jnp.float32)

    lane = jax.lax.broadcasted_iota(jnp.int32, x.shape, 2)
    valid = ((lane + i * hw_tile) < hw_real).astype(jnp.float32)

    # fused stable sigmoid / log-sigmoid: 3 EUP ops per element total.
    e = jnp.exp(-jnp.abs(x))
    sp = jnp.log1p(e)                                         # softplus(-|x|)
    log_p = jnp.minimum(x, 0.0) - sp                          # log(sigmoid(x))
    log_1mp = -jnp.maximum(x, 0.0) - sp                       # log(1-sigmoid(x))
    r = 1.0 / (1.0 + e)
    p = jnp.where(x >= 0.0, r, e * r)                         # sigmoid(x)
    omp = 1.0 - p

    pos_w = (gt == 1.0).astype(jnp.float32) * valid
    omg = (1.0 - gt) * valid
    omg2 = omg * omg                                          # (1-gt)^2
    neg_w = omg2 * omg2                                       # (1-gt)^4
    tile_loss = jnp.sum((-log_p) * (omp * omp) * pos_w
                        + (-log_1mp) * (p * p) * neg_w)
    tile_pos = jnp.sum(pos_w)

    # ------------------------------------------------------------------
    # proposal-side losses (tiny): computed once, at grid step 0
    # ------------------------------------------------------------------
    @pl.when(i == 0)
    def _():
        logits = hm_ref[...].astype(jnp.float32)              # (B, C, Pp)
        labels = labels_ref[...]                              # (B, Pp) int32

        cls_ids = jax.lax.broadcasted_iota(jnp.int32, logits.shape, 1)
        lane_p = jax.lax.broadcasted_iota(jnp.int32, logits.shape, 2)
        pvalid = (lane_p < p_real).astype(jnp.float32)
        tgt = (labels[:, None, :] == cls_ids).astype(jnp.float32)

        ea = jnp.exp(-jnp.abs(logits))
        spa = jnp.log1p(ea)
        bce = jnp.maximum(logits, 0.0) - logits * tgt + spa
        ra = 1.0 / (1.0 + ea)
        prob = jnp.where(logits >= 0.0, ra, ea * ra)
        pt = (1.0 - prob) * tgt + prob * (1.0 - tgt)
        focal_w = (FOCAL_ALPHA * tgt + (1.0 - FOCAL_ALPHA) * (1.0 - tgt)) * (pt * pt)
        cls_sum = jnp.sum(bce * focal_w * pvalid)

        lane2 = jax.lax.broadcasted_iota(jnp.int32, labels.shape, 1)
        mask = jnp.logical_and(labels < num_classes,
                               lane2 < p_real).astype(jnp.float32)   # (B, Pp)

        diff = jnp.abs(boxp_ref[...].astype(jnp.float32)
                       - boxt_ref[...].astype(jnp.float32)) * mask[:, None, :]
        sub = jax.lax.broadcasted_iota(jnp.int32, diff.shape, 1)
        center_sum = jnp.sum(jnp.where(sub < 2, diff, 0.0))
        dim_sum = jnp.sum(jnp.where(jnp.logical_and(sub >= 2, sub < 4), diff, 0.0))
        rot_sum = jnp.sum(jnp.where(sub >= 4, diff, 0.0))

        out_ref[0] = tile_loss
        out_ref[1] = tile_pos
        out_ref[2] = cls_sum
        out_ref[3] = center_sum
        out_ref[4] = dim_sum
        out_ref[5] = rot_sum
        out_ref[6] = jnp.sum(mask)
        out_ref[7] = 0.0

    @pl.when(i > 0)
    def _():
        out_ref[0] = out_ref[0] + tile_loss
        out_ref[1] = out_ref[1] + tile_pos


def set_criterion_forward(pred, heatmap_gt, label_targets, box_targets, *,
                          hw_tile=2048):
    """pred: dict with 'heatmap' (B,C,P), 'dense_heatmap' (B,C,H,W),
    'center'/'dim'/'rot' (B,2,P).  label_targets (B,P) int, box_targets (B,6,P)
    come from the (untranslated) Hungarian assignment stage."""
    hm = pred["heatmap"]
    B, C, P = hm.shape
    dense = pred["dense_heatmap"]
    H, W = dense.shape[-2], dense.shape[-1]
    HW = H * W

    def rup(v, m):
        return (v + m - 1) // m * m

    p_pad = rup(max(P, 1), 128)
    hw_tile = min(rup(hw_tile, 128), rup(HW, 128))
    hw_pad = rup(HW, hw_tile)
    n_steps = hw_pad // hw_tile

    # dense heatmap + gt, spatial flattened onto lanes; padded lanes are masked
    # exactly inside the kernel.
    dense_f = dense.reshape(B, C, HW)
    gt_f = heatmap_gt.reshape(B, C, HW)
    if hw_pad != HW:
        dense_f = jnp.pad(dense_f, ((0, 0), (0, 0), (0, hw_pad - HW)))
        gt_f = jnp.pad(gt_f, ((0, 0), (0, 0), (0, hw_pad - HW)))

    def pad_p(x, value=0):
        if x.shape[-1] == p_pad:
            return x
        cfg = [(0, 0)] * (x.ndim - 1) + [(0, p_pad - x.shape[-1])]
        return jnp.pad(x, cfg, constant_values=value)

    hm_p = pad_p(hm)
    labels_p = pad_p(label_targets.astype(jnp.int32), value=C)  # pad = background
    boxp_p = pad_p(jnp.concatenate([pred["center"], pred["dim"], pred["rot"]],
                                   axis=1))                     # (B, 6, Pp)
    boxt_p = pad_p(box_targets)

    kernel = functools.partial(set_criterion_kernel, p_real=P, hw_real=HW)

    sums = pl.pallas_call(
        kernel,
        out_shape=jax.ShapeDtypeStruct((8,), jnp.float32),
        grid=(n_steps,),
        in_specs=[
            pl.BlockSpec((B, C, hw_tile), lambda i: (0, 0, i)),   # dense logits
            pl.BlockSpec((B, C, hw_tile), lambda i: (0, 0, i)),   # heatmap gt
            pl.BlockSpec((B, C, p_pad), lambda i: (0, 0, 0)),     # cls logits
            pl.BlockSpec((B, p_pad), lambda i: (0, 0)),           # labels
            pl.BlockSpec((B, 6, p_pad), lambda i: (0, 0, 0)),     # box preds
            pl.BlockSpec((B, 6, p_pad), lambda i: (0, 0, 0)),     # box targets
        ],
        out_specs=pl.BlockSpec(memory_space=pltpu.MemorySpace.SMEM),
        compiler_params=pltpu.CompilerParams(
            dimension_semantics=("arbitrary",)),                  # reduction axis
    )(dense_f, gt_f, hm_p, labels_p, boxp_p, boxt_p)

    # final (tiny) scalar normalizations in JAX.
    heatmap_loss = sums[0] / jnp.maximum(sums[1], 1.0)
    cls_loss = sums[2] / float(B * C * P)
    inv_den = 1.0 / jnp.maximum(sums[6], 1.0)
    center_loss = L1_WEIGHT * sums[3] * inv_den
    dim_loss = L1_WEIGHT * sums[4] * inv_den
    rot_loss = L1_WEIGHT * sums[5] * inv_den
    total = cls_loss + heatmap_loss + center_loss + dim_loss + rot_loss

    return {"loss": total, "cls": cls_loss, "heatmap": heatmap_loss,
            "center": center_loss, "dim": dim_loss, "rot": rot_loss}


# -------------------- pure-JAX reference for verification --------------------
def _reference(pred, heatmap_gt, labels, box_targets):
    B, C, P = pred["heatmap"].shape
    logits = pred["heatmap"].astype(jnp.float32)
    tgt = (labels[:, None, :] == jnp.arange(C)[None, :, None]).astype(jnp.float32)
    prob = jax.nn.sigmoid(logits)
    bce = jnp.maximum(logits, 0.0) - logits * tgt + jnp.log1p(jnp.exp(-jnp.abs(logits)))
    pt = (1 - prob) * tgt + prob * (1 - tgt)
    fw = (FOCAL_ALPHA * tgt + (1 - FOCAL_ALPHA) * (1 - tgt)) * pt ** FOCAL_GAMMA
    cls_loss = jnp.mean(bce * fw)

    hm_pred = jax.nn.sigmoid(pred["dense_heatmap"].astype(jnp.float32))
    gt = heatmap_gt.astype(jnp.float32)
    pos_w = (gt == 1.0).astype(jnp.float32)
    pos = -jnp.log(hm_pred + EPS) * (1 - hm_pred) ** HM_ALPHA * pos_w
    neg = -jnp.log(1 - hm_pred + EPS) * hm_pred ** HM_ALPHA * (1 - gt) ** HM_GAMMA
    hm_loss = jnp.sum(pos + neg) / jnp.maximum(jnp.sum(pos_w), 1.0)

    masks = (labels < C).astype(jnp.float32)
    m = masks[:, None, :]
    den = jnp.maximum(jnp.sum(masks), 1.0)

    def l1(p, t):
        return L1_WEIGHT * jnp.sum(jnp.abs(p.astype(jnp.float32) - t) * m) / den

    c = l1(pred["center"], box_targets[:, 0:2, :])
    d = l1(pred["dim"], box_targets[:, 2:4, :])
    r = l1(pred["rot"], box_targets[:, 4:6, :])
    return {"loss": cls_loss + hm_loss + c + d + r, "cls": cls_loss,
            "heatmap": hm_loss, "center": c, "dim": d, "rot": r}


if __name__ == "__main__":
    key = jax.random.PRNGKey(0)
    B, num_classes, P, H, W = 2, 4, 16, 16, 16

    ks = jax.random.split(key, 8)
    pred = {
        "heatmap": jax.random.normal(ks[0], (B, num_classes, P), jnp.float32),
        # dense heatmap fed in the network's native bf16 (kernel upcasts in VMEM)
        "dense_heatmap": jax.random.normal(
            ks[1], (B, num_classes, H, W), jnp.float32).astype(jnp.bfloat16),
        "center": jax.random.normal(ks[2], (B, 2, P), jnp.float32),
        "dim": jax.random.normal(ks[3], (B, 2, P), jnp.float32),
        "rot": jax.random.normal(ks[4], (B, 2, P), jnp.float32),
    }

    # Gaussian-style GT heatmap in [0, 1) with a few exact-1.0 peaks.
    heatmap_gt = jax.random.uniform(ks[5], (B, num_classes, H, W), jnp.float32) * 0.9
    heatmap_gt = heatmap_gt.at[:, :, 4, 4].set(1.0).at[:, :, 10, 11].set(1.0)
    heatmap_gt = heatmap_gt.astype(jnp.bfloat16)

    # Synthetic outputs of the Hungarian assignment stage
    # (label == num_classes means background / unassigned).
    label_targets = jax.random.randint(ks[6], (B, P), 0, num_classes + 1, jnp.int32)
    assigned = (label_targets < num_classes).astype(jnp.float32)
    box_targets = jax.random.normal(ks[7], (B, 6, P), jnp.float32) * assigned[:, None, :]

    # hw_tile=128 -> 2 grid steps at this toy size, exercising the pipelined
    # accumulation path (production default is 2048 lanes per step).
    loss_dict = set_criterion_forward(pred, heatmap_gt, label_targets, box_targets,
                                      hw_tile=128)
    jax.block_until_ready(loss_dict["loss"])

    ref = _reference(pred, heatmap_gt, label_targets, box_targets)
    for k in ("loss", "cls", "heatmap", "center", "dim", "rot"):
        assert jnp.allclose(loss_dict[k], ref[k], rtol=5e-4, atol=1e-5), \
            (k, loss_dict[k], ref[k])

    print("KERNEL_OK")
</pallas_src>

<mosaic_0001>
module attributes {stable_mosaic.version = 11 : i64} {
  func.func @set_criterion_kernel(%arg0: i32, %arg1: memref<2x4x128xbf16, #tpu.memory_space<vmem>>, %arg2: memref<2x4x128xbf16, #tpu.memory_space<vmem>>, %arg3: memref<2x4x128xf32, #tpu.memory_space<vmem>>, %arg4: memref<2x128xi32, #tpu.memory_space<vmem>>, %arg5: memref<2x6x128xf32, #tpu.memory_space<vmem>>, %arg6: memref<2x6x128xf32, #tpu.memory_space<vmem>>, %arg7: memref<8xf32, #tpu.memory_space<smem>>) attributes {dimension_semantics = [#tpu.dimension_semantics<arbitrary>], iteration_bounds = array<i64: 2>, scalar_prefetch = 0 : i64, scratch_operands = 0 : i64, tpu.core_type = #tpu.core_type<tc>, window_params = [{transform_indices = @transform_0, window_bounds = array<i64: 2, 4, 128>}, {transform_indices = @transform_1, window_bounds = array<i64: 2, 4, 128>}, {pipeline_mode = #tpu.pipeline_mode<synchronous>, transform_indices = @transform_2, window_bounds = array<i64: 2, 4, 128>}, {pipeline_mode = #tpu.pipeline_mode<synchronous>, transform_indices = @transform_3, window_bounds = array<i64: 2, 128>}, {pipeline_mode = #tpu.pipeline_mode<synchronous>, transform_indices = @transform_4, window_bounds = array<i64: 2, 6, 128>}, {pipeline_mode = #tpu.pipeline_mode<synchronous>, transform_indices = @transform_5, window_bounds = array<i64: 2, 6, 128>}, {transform_indices = @transform_6, window_bounds = array<i64: 8>}]} {
    %c0 = arith.constant 0 : index
    %c0_0 = arith.constant 0 : index
    %c0_1 = arith.constant 0 : index
    %0 = vector.load %arg1[%c0, %c0_0, %c0_1] : memref<2x4x128xbf16, #tpu.memory_space<vmem>>, vector<2x4x128xbf16>
    %1 = arith.extf %0 : vector<2x4x128xbf16> to vector<2x4x128xf32>
    %c0_2 = arith.constant 0 : index
    %c0_3 = arith.constant 0 : index
    %c0_4 = arith.constant 0 : index
    %2 = vector.load %arg2[%c0_2, %c0_3, %c0_4] : memref<2x4x128xbf16, #tpu.memory_space<vmem>>, vector<2x4x128xbf16>
    %3 = arith.extf %2 : vector<2x4x128xbf16> to vector<2x4x128xf32>
    %4 = tpu.iota {dimensions = array<i32: 2>} : vector<2x4x128xi32>
    %c128_i32 = arith.constant 128 : i32
    %5 = arith.muli %arg0, %c128_i32 : i32
    %6 = vector.broadcast %5 : i32 to vector<2x4x128xi32>
    %7 = arith.addi %4, %6 : vector<2x4x128xi32>
    %c256_i32 = arith.constant 256 : i32
    %8 = vector.broadcast %c256_i32 : i32 to vector<2x4x128xi32>
    %9 = arith.cmpi slt, %7, %8 : vector<2x4x128xi32>
    %10 = arith.extui %9 : vector<2x4x128xi1> to vector<2x4x128xi32>
    %11 = arith.sitofp %10 : vector<2x4x128xi32> to vector<2x4x128xf32>
    %12 = math.absf %1 : vector<2x4x128xf32>
    %cst = arith.constant 0.000000e+00 : f32
    %13 = vector.broadcast %cst : f32 to vector<2x4x128xf32>
    %14 = arith.subf %13, %12 : vector<2x4x128xf32>
    %15 = math.exp %14 : vector<2x4x128xf32>
    %16 = math.log1p %15 : vector<2x4x128xf32>
    %cst_5 = arith.constant 0.000000e+00 : f32
    %17 = vector.broadcast %cst_5 : f32 to vector<2x4x128xf32>
    %18 = arith.minimumf %1, %17 : vector<2x4x128xf32>
    %19 = arith.subf %18, %16 : vector<2x4x128xf32>
    %cst_6 = arith.constant 0.000000e+00 : f32
    %20 = vector.broadcast %cst_6 : f32 to vector<2x4x128xf32>
    %21 = arith.maximumf %1, %20 : vector<2x4x128xf32>
    %cst_7 = arith.constant 0.000000e+00 : f32
    %22 = vector.broadcast %cst_7 : f32 to vector<2x4x128xf32>
    %23 = arith.subf %22, %21 : vector<2x4x128xf32>
    %24 = arith.subf %23, %16 : vector<2x4x128xf32>
    %cst_8 = arith.constant 1.000000e+00 : f32
    %25 = vector.broadcast %cst_8 : f32 to vector<2x4x128xf32>
    %26 = arith.addf %25, %15 : vector<2x4x128xf32>
    %cst_9 = arith.constant 1.000000e+00 : f32
    %27 = vector.broadcast %cst_9 : f32 to vector<2x4x128xf32>
    %28 = arith.divf %27, %26 : vector<2x4x128xf32>
    %cst_10 = arith.constant 0.000000e+00 : f32
    %29 = vector.broadcast %cst_10 : f32 to vector<2x4x128xf32>
    %30 = arith.cmpf oge, %1, %29 : vector<2x4x128xf32>
    %31 = arith.mulf %15, %28 : vector<2x4x128xf32>
    %32 = arith.select %30, %28, %31 : vector<2x4x128xi1>, vector<2x4x128xf32>
    %cst_11 = arith.constant 1.000000e+00 : f32
    %33 = vector.broadcast %cst_11 : f32 to vector<2x4x128xf32>
    %34 = arith.subf %33, %32 : vector<2x4x128xf32>
    %cst_12 = arith.constant 1.000000e+00 : f32
    %35 = vector.broadcast %cst_12 : f32 to vector<2x4x128xf32>
    %36 = arith.cmpf oeq, %3, %35 : vector<2x4x128xf32>
    %37 = arith.extui %36 : vector<2x4x128xi1> to vector<2x4x128xi32>
    %38 = arith.sitofp %37 : vector<2x4x128xi32> to vector<2x4x128xf32>
    %39 = arith.mulf %38, %11 : vector<2x4x128xf32>
    %cst_13 = arith.constant 1.000000e+00 : f32
    %40 = vector.broadcast %cst_13 : f32 to vector<2x4x128xf32>
    %41 = arith.subf %40, %3 : vector<2x4x128xf32>
    %42 = arith.mulf %41, %11 : vector<2x4x128xf32>
    %43 = arith.mulf %42, %42 : vector<2x4x128xf32>
    %44 = arith.mulf %43, %43 : vector<2x4x128xf32>
    %cst_14 = arith.constant 0.000000e+00 : f32
    %45 = vector.broadcast %cst_14 : f32 to vector<2x4x128xf32>
    %46 = arith.subf %45, %19 : vector<2x4x128xf32>
    %47 = arith.mulf %34, %34 : vector<2x4x128xf32>
    %48 = arith.mulf %46, %47 : vector<2x4x128xf32>
    %49 = arith.mulf %48, %39 : vector<2x4x128xf32>
    %cst_15 = arith.constant 0.000000e+00 : f32
    %50 = vector.broadcast %cst_15 : f32 to vector<2x4x128xf32>
    %51 = arith.subf %50, %24 : vector<2x4x128xf32>
    %52 = arith.mulf %32, %32 : vector<2x4x128xf32>
    %53 = arith.mulf %51, %52 : vector<2x4x128xf32>
    %54 = arith.mulf %53, %44 : vector<2x4x128xf32>
    %55 = arith.addf %49, %54 : vector<2x4x128xf32>
    %56 = vector.shape_cast %55 : vector<2x4x128xf32> to vector<1x2x4x128xf32>
    %cst_16 = arith.constant dense<0.000000e+00> : vector<1xf32>
    %57 = vector.multi_reduction <add>, %56, %cst_16 [1, 2, 3] : vector<1x2x4x128xf32> to vector<1xf32>
    %58 = vector.shape_cast %57 : vector<1xf32> to vector<1x1x1x1xf32>
    %59 = vector.extract %58[0, 0, 0, 0] : f32 from vector<1x1x1x1xf32>
    %60 = vector.shape_cast %39 : vector<2x4x128xf32> to vector<1x2x4x128xf32>
    %cst_17 = arith.constant dense<0.000000e+00> : vector<1xf32>
    %61 = vector.multi_reduction <add>, %60, %cst_17 [1, 2, 3] : vector<1x2x4x128xf32> to vector<1xf32>
    %62 = vector.shape_cast %61 : vector<1xf32> to vector<1x1x1x1xf32>
    %63 = vector.extract %62[0, 0, 0, 0] : f32 from vector<1x1x1x1xf32>
    %c0_i32 = arith.constant 0 : i32
    %64 = arith.cmpi eq, %arg0, %c0_i32 : i32
    %65 = arith.extui %64 : i1 to i32
    %c0_i32_18 = arith.constant 0 : i32
    %66 = arith.cmpi ne, %65, %c0_i32_18 : i32
    scf.if %66 {
      %c0_21 = arith.constant 0 : index
      %c0_22 = arith.constant 0 : index
      %c0_23 = arith.constant 0 : index
      %70 = vector.load %arg3[%c0_21, %c0_22, %c0_23] : memref<2x4x128xf32, #tpu.memory_space<vmem>>, vector<2x4x128xf32>
      %c0_24 = arith.constant 0 : index
      %c0_25 = arith.constant 0 : index
      %71 = vector.load %arg4[%c0_24, %c0_25] : memref<2x128xi32, #tpu.memory_space<vmem>>, vector<2x128xi32>
      %72 = tpu.iota {dimensions = array<i32: 1>} : vector<2x4x128xi32>
      %73 = tpu.iota {dimensions = array<i32: 2>} : vector<2x4x128xi32>
      %c16_i32 = arith.constant 16 : i32
      %74 = vector.broadcast %c16_i32 : i32 to vector<2x4x128xi32>
      %75 = arith.cmpi slt, %73, %74 : vector<2x4x128xi32>
      %76 = arith.extui %75 : vector<2x4x128xi1> to vector<2x4x128xi32>
      %77 = arith.sitofp %76 : vector<2x4x128xi32> to vector<2x4x128xf32>
      %78 = vector.shape_cast %71 : vector<2x128xi32> to vector<2x1x128xi32>
      %79 = vector.broadcast %78 : vector<2x1x128xi32> to vector<2x4x128xi32>
      %80 = arith.cmpi eq, %79, %72 : vector<2x4x128xi32>
      %81 = arith.extui %80 : vector<2x4x128xi1> to vector<2x4x128xi32>
      %82 = arith.sitofp %81 : vector<2x4x128xi32> to vector<2x4x128xf32>
      %83 = math.absf %70 : vector<2x4x128xf32>
      %cst_26 = arith.constant 0.000000e+00 : f32
      %84 = vector.broadcast %cst_26 : f32 to vector<2x4x128xf32>
      %85 = arith.subf %84, %83 : vector<2x4x128xf32>
      %86 = math.exp %85 : vector<2x4x128xf32>
      %87 = math.log1p %86 : vector<2x4x128xf32>
      %cst_27 = arith.constant 0.000000e+00 : f32
      %88 = vector.broadcast %cst_27 : f32 to vector<2x4x128xf32>
      %89 = arith.maximumf %70, %88 : vector<2x4x128xf32>
      %90 = arith.mulf %70, %82 : vector<2x4x128xf32>
      %91 = arith.subf %89, %90 : vector<2x4x128xf32>
      %92 = arith.addf %91, %87 : vector<2x4x128xf32>
      %cst_28 = arith.constant 1.000000e+00 : f32
      %93 = vector.broadcast %cst_28 : f32 to vector<2x4x128xf32>
      %94 = arith.addf %93, %86 : vector<2x4x128xf32>
      %cst_29 = arith.constant 1.000000e+00 : f32
      %95 = vector.broadcast %cst_29 : f32 to vector<2x4x128xf32>
      %96 = arith.divf %95, %94 : vector<2x4x128xf32>
      %cst_30 = arith.constant 0.000000e+00 : f32
      %97 = vector.broadcast %cst_30 : f32 to vector<2x4x128xf32>
      %98 = arith.cmpf oge, %70, %97 : vector<2x4x128xf32>
      %99 = arith.mulf %86, %96 : vector<2x4x128xf32>
      %100 = arith.select %98, %96, %99 : vector<2x4x128xi1>, vector<2x4x128xf32>
      %cst_31 = arith.constant 1.000000e+00 : f32
      %101 = vector.broadcast %cst_31 : f32 to vector<2x4x128xf32>
      %102 = arith.subf %101, %100 : vector<2x4x128xf32>
      %103 = arith.mulf %102, %82 : vector<2x4x128xf32>
      %cst_32 = arith.constant 1.000000e+00 : f32
      %104 = vector.broadcast %cst_32 : f32 to vector<2x4x128xf32>
      %105 = arith.subf %104, %82 : vector<2x4x128xf32>
      %106 = arith.mulf %100, %105 : vector<2x4x128xf32>
      %107 = arith.addf %103, %106 : vector<2x4x128xf32>
      %cst_33 = arith.constant 2.500000e-01 : f32
      %108 = vector.broadcast %cst_33 : f32 to vector<2x4x128xf32>
      %109 = arith.mulf %108, %82 : vector<2x4x128xf32>
      %cst_34 = arith.constant 1.000000e+00 : f32
      %110 = vector.broadcast %cst_34 : f32 to vector<2x4x128xf32>
      %111 = arith.subf %110, %82 : vector<2x4x128xf32>
      %cst_35 = arith.constant 7.500000e-01 : f32
      %112 = vector.broadcast %cst_35 : f32 to vector<2x4x128xf32>
      %113 = arith.mulf %112, %111 : vector<2x4x128xf32>
      %114 = arith.addf %109, %113 : vector<2x4x128xf32>
      %115 = arith.mulf %107, %107 : vector<2x4x128xf32>
      %116 = arith.mulf %114, %115 : vector<2x4x128xf32>
      %117 = arith.mulf %92, %116 : vector<2x4x128xf32>
      %118 = arith.mulf %117, %77 : vector<2x4x128xf32>
      %119 = vector.shape_cast %118 : vector<2x4x128xf32> to vector<1x2x4x128xf32>
      %cst_36 = arith.constant dense<0.000000e+00> : vector<1xf32>
      %120 = vector.multi_reduction <add>, %119, %cst_36 [1, 2, 3] : vector<1x2x4x128xf32> to vector<1xf32>
      %121 = vector.shape_cast %120 : vector<1xf32> to vector<1x1x1x1xf32>
      %122 = vector.extract %121[0, 0, 0, 0] : f32 from vector<1x1x1x1xf32>
      %123 = tpu.iota {dimensions = array<i32: 1>} : vector<2x128xi32>
      %c4_i32 = arith.constant 4 : i32
      %124 = vector.broadcast %c4_i32 : i32 to vector<2x128xi32>
      %125 = arith.cmpi slt, %71, %124 : vector<2x128xi32>
      %c16_i32_37 = arith.constant 16 : i32
      %126 = vector.broadcast %c16_i32_37 : i32 to vector<2x128xi32>
      %127 = arith.cmpi slt, %123, %126 : vector<2x128xi32>
      %128 = arith.andi %125, %127 : vector<2x128xi1>
      %129 = arith.extui %128 : vector<2x128xi1> to vector<2x128xi32>
      %130 = arith.sitofp %129 : vector<2x128xi32> to vector<2x128xf32>
      %c0_38 = arith.constant 0 : index
      %c0_39 = arith.constant 0 : index
      %c0_40 = arith.constant 0 : index
      %131 = vector.load %arg5[%c0_38, %c0_39, %c0_40] : memref<2x6x128xf32, #tpu.memory_space<vmem>>, vector<2x6x128xf32>
      %c0_41 = arith.constant 0 : index
      %c0_42 = arith.constant 0 : index
      %c0_43 = arith.constant 0 : index
      %132 = vector.load %arg6[%c0_41, %c0_42, %c0_43] : memref<2x6x128xf32, #tpu.memory_space<vmem>>, vector<2x6x128xf32>
      %133 = arith.subf %131, %132 : vector<2x6x128xf32>
      %134 = math.absf %133 : vector<2x6x128xf32>
      %135 = vector.shape_cast %130 : vector<2x128xf32> to vector<2x1x128xf32>
      %136 = vector.broadcast %135 : vector<2x1x128xf32> to vector<2x6x128xf32>
      %137 = arith.mulf %134, %136 : vector<2x6x128xf32>
      %138 = tpu.iota {dimensions = array<i32: 1>} : vector<2x6x128xi32>
      %c2_i32 = arith.constant 2 : i32
      %139 = vector.broadcast %c2_i32 : i32 to vector<2x6x128xi32>
      %140 = arith.cmpi slt, %138, %139 : vector<2x6x128xi32>
      %cst_44 = arith.constant 0.000000e+00 : f32
      %141 = vector.broadcast %cst_44 : f32 to vector<2x6x128xf32>
      %142 = arith.select %140, %137, %141 : vector<2x6x128xi1>, vector<2x6x128xf32>
      %143 = vector.shape_cast %142 : vector<2x6x128xf32> to vector<1x2x6x128xf32>
      %cst_45 = arith.constant dense<0.000000e+00> : vector<1xf32>
      %144 = vector.multi_reduction <add>, %143, %cst_45 [1, 2, 3] : vector<1x2x6x128xf32> to vector<1xf32>
      %145 = vector.shape_cast %144 : vector<1xf32> to vector<1x1x1x1xf32>
      %146 = vector.extract %145[0, 0, 0, 0] : f32 from vector<1x1x1x1xf32>
      %c2_i32_46 = arith.constant 2 : i32
      %147 = vector.broadcast %c2_i32_46 : i32 to vector<2x6x128xi32>
      %148 = arith.cmpi sge, %138, %147 : vector<2x6x128xi32>
      %c4_i32_47 = arith.constant 4 : i32
      %149 = vector.broadcast %c4_i32_47 : i32 to vector<2x6x128xi32>
      %150 = arith.cmpi slt, %138, %149 : vector<2x6x128xi32>
      %151 = arith.andi %148, %150 : vector<2x6x128xi1>
      %cst_48 = arith.constant 0.000000e+00 : f32
      %152 = vector.broadcast %cst_48 : f32 to vector<2x6x128xf32>
      %153 = arith.select %151, %137, %152 : vector<2x6x128xi1>, vector<2x6x128xf32>
      %154 = vector.shape_cast %153 : vector<2x6x128xf32> to vector<1x2x6x128xf32>
      %cst_49 = arith.constant dense<0.000000e+00> : vector<1xf32>
      %155 = vector.multi_reduction <add>, %154, %cst_49 [1, 2, 3] : vector<1x2x6x128xf32> to vector<1xf32>
      %156 = vector.shape_cast %155 : vector<1xf32> to vector<1x1x1x1xf32>
      %157 = vector.extract %156[0, 0, 0, 0] : f32 from vector<1x1x1x1xf32>
      %c4_i32_50 = arith.constant 4 : i32
      %158 = vector.broadcast %c4_i32_50 : i32 to vector<2x6x128xi32>
      %159 = arith.cmpi sge, %138, %158 : vector<2x6x128xi32>
      %cst_51 = arith.constant 0.000000e+00 : f32
      %160 = vector.broadcast %cst_51 : f32 to vector<2x6x128xf32>
      %161 = arith.select %159, %137, %160 : vector<2x6x128xi1>, vector<2x6x128xf32>
      %162 = vector.shape_cast %161 : vector<2x6x128xf32> to vector<1x2x6x128xf32>
      %cst_52 = arith.constant dense<0.000000e+00> : vector<1xf32>
      %163 = vector.multi_reduction <add>, %162, %cst_52 [1, 2, 3] : vector<1x2x6x128xf32> to vector<1xf32>
      %164 = vector.shape_cast %163 : vector<1xf32> to vector<1x1x1x1xf32>
      %165 = vector.extract %164[0, 0, 0, 0] : f32 from vector<1x1x1x1xf32>
      %c0_53 = arith.constant 0 : index
      %166 = memref.load %arg7[%c0_53] : memref<8xf32, #tpu.memory_space<smem>>
      memref.store %59, %arg7[%c0_53] : memref<8xf32, #tpu.memory_space<smem>>
      %c1 = arith.constant 1 : index
      %167 = memref.load %arg7[%c1] : memref<8xf32, #tpu.memory_space<smem>>
      memref.store %63, %arg7[%c1] : memref<8xf32, #tpu.memory_space<smem>>
      %c2 = arith.constant 2 : index
      %168 = memref.load %arg7[%c2] : memref<8xf32, #tpu.memory_space<smem>>
      memref.store %122, %arg7[%c2] : memref<8xf32, #tpu.memory_space<smem>>
      %c3 = arith.constant 3 : index
      %169 = memref.load %arg7[%c3] : memref<8xf32, #tpu.memory_space<smem>>
      memref.store %146, %arg7[%c3] : memref<8xf32, #tpu.memory_space<smem>>
      %c4 = arith.constant 4 : index
      %170 = memref.load %arg7[%c4] : memref<8xf32, #tpu.memory_space<smem>>
      memref.store %157, %arg7[%c4] : memref<8xf32, #tpu.memory_space<smem>>
      %c5 = arith.constant 5 : index
      %171 = memref.load %arg7[%c5] : memref<8xf32, #tpu.memory_space<smem>>
      memref.store %165, %arg7[%c5] : memref<8xf32, #tpu.memory_space<smem>>
      %172 = vector.shape_cast %130 : vector<2x128xf32> to vector<1x2x128xf32>
      %cst_54 = arith.constant dense<0.000000e+00> : vector<1xf32>
      %173 = vector.multi_reduction <add>, %172, %cst_54 [1, 2] : vector<1x2x128xf32> to vector<1xf32>
      %174 = vector.shape_cast %173 : vector<1xf32> to vector<1x1x1xf32>
      %175 = vector.extract %174[0, 0, 0] : f32 from vector<1x1x1xf32>
      %c6 = arith.constant 6 : index
      %176 = memref.load %arg7[%c6] : memref<8xf32, #tpu.memory_space<smem>>
      memref.store %175, %arg7[%c6] : memref<8xf32, #tpu.memory_space<smem>>
      %cst_55 = arith.constant 0.000000e+00 : f32
      %c7 = arith.constant 7 : index
      %177 = memref.load %arg7[%c7] : memref<8xf32, #tpu.memory_space<smem>>
      memref.store %cst_55, %arg7[%c7] : memref<8xf32, #tpu.memory_space<smem>>
    } else {
    }
    %c0_i32_19 = arith.constant 0 : i32
    %67 = arith.cmpi sgt, %arg0, %c0_i32_19 : i32
    %68 = arith.extui %67 : i1 to i32
    %c0_i32_20 = arith.constant 0 : i32
    %69 = arith.cmpi ne, %68, %c0_i32_20 : i32
    scf.if %69 {
      %c0_21 = arith.constant 0 : index
      %70 = memref.load %arg7[%c0_21] : memref<8xf32, #tpu.memory_space<smem>>
      %71 = arith.addf %70, %59 : f32
      %c0_22 = arith.constant 0 : index
      %72 = memref.load %arg7[%c0_22] : memref<8xf32, #tpu.memory_space<smem>>
      memref.store %71, %arg7[%c0_22] : memref<8xf32, #tpu.memory_space<smem>>
      %c1 = arith.constant 1 : index
      %73 = memref.load %arg7[%c1] : memref<8xf32, #tpu.memory_space<smem>>
      %74 = arith.addf %73, %63 : f32
      %c1_23 = arith.constant 1 : index
      %75 = memref.load %arg7[%c1_23] : memref<8xf32, #tpu.memory_space<smem>>
      memref.store %74, %arg7[%c1_23] : memref<8xf32, #tpu.memory_space<smem>>
    } else {
    }
    return
  }
  func.func @transform_0(%arg0: i32) -> (i32, i32, i32) {
    %c0_i32 = arith.constant 0 : i32
    %c0_i32_0 = arith.constant 0 : i32
    %c0_i32_1 = arith.constant 0 : i32
    return %c0_i32, %c0_i32_0, %arg0 : i32, i32, i32
  }
  func.func @transform_1(%arg0: i32) -> (i32, i32, i32) {
    %c0_i32 = arith.constant 0 : i32
    %c0_i32_0 = arith.constant 0 : i32
    %c0_i32_1 = arith.constant 0 : i32
    return %c0_i32, %c0_i32_0, %arg0 : i32, i32, i32
  }
  func.func @transform_2(%arg0: i32) -> (i32, i32, i32) {
    %c0_i32 = arith.constant 0 : i32
    %c0_i32_0 = arith.constant 0 : i32
    %c0_i32_1 = arith.constant 0 : i32
    %c0_i32_2 = arith.constant 0 : i32
    return %c0_i32, %c0_i32_0, %c0_i32_1 : i32, i32, i32
  }
  func.func @transform_3(%arg0: i32) -> (i32, i32) {
    %c0_i32 = arith.constant 0 : i32
    %c0_i32_0 = arith.constant 0 : i32
    %c0_i32_1 = arith.constant 0 : i32
    return %c0_i32, %c0_i32_0 : i32, i32
  }
  func.func @transform_4(%arg0: i32) -> (i32, i32, i32) {
    %c0_i32 = arith.constant 0 : i32
    %c0_i32_0 = arith.constant 0 : i32
    %c0_i32_1 = arith.constant 0 : i32
    %c0_i32_2 = arith.constant 0 : i32
    return %c0_i32, %c0_i32_0, %c0_i32_1 : i32, i32, i32
  }
  func.func @transform_5(%arg0: i32) -> (i32, i32, i32) {
    %c0_i32 = arith.constant 0 : i32
    %c0_i32_0 = arith.constant 0 : i32
    %c0_i32_1 = arith.constant 0 : i32
    %c0_i32_2 = arith.constant 0 : i32
    return %c0_i32, %c0_i32_0, %c0_i32_1 : i32, i32, i32
  }
  func.func @transform_6(%arg0: i32) -> i32 {
    %c0_i32 = arith.constant 0 : i32
    %c0_i32_0 = arith.constant 0 : i32
    return %c0_i32 : i32
  }
}

</mosaic_0001>

<llo_original>
// kernel: tpu_custom_call.1
$region0: #{tpu_custom_call.1}
  #allocation0 [shape = 'u32[]', space=smem, size = 0x4, offset = 0x4, fixed_abs, tag = 'smem constant byte address 0x4 - core index']
  #allocation1 [shape = 'u32[144,128]{1,0:T(1,128)}', space=vmem, size = 0x12000, scoped, tag = 'internal scratch']
  %s0 = inlined_call_operand.vmem [shape: bf16[2,4,256], index: 0, kind: input, shape index: {}]
  %s1 = inlined_call_operand.vmem [shape: bf16[2,4,256], index: 1, kind: input, shape index: {}]
  %s2 = inlined_call_operand.vmem [shape: f32[2,4,128], index: 2, kind: input, shape index: {}]
  %s3 = inlined_call_operand.vmem [shape: s32[2,128], index: 3, kind: input, shape index: {}]
  %s4 = inlined_call_operand.vmem [shape: f32[2,6,128], index: 4, kind: input, shape index: {}]
  %s5 = inlined_call_operand.vmem [shape: f32[2,6,128], index: 5, kind: input, shape index: {}]
  %s6 = inlined_call_operand.hbm [shape: f32[8], index: 6, kind: output, shape index: {}]
  %s7 = sld [smem:[#allocation0]]
  $region133: #{tpu_custom_call.1} parent=0
    _
  %s9 = ssub.s32 1, %s7
  %s10 = scalar_select 0, %s9, %s7
  $region1: #{tpu_custom_call.1} parent=0
    #allocation2 [shape = 'u8[4096]{0}', space=vmem, size = 0x1000, scoped, tag = 'input window, operand 0']
    #allocation3 [shape = 'u8[4096]{0}', space=vmem, size = 0x1000, scoped, tag = 'input window, operand 1']
    #allocation4 [shape = 'u8[512]{0}', space=smem, size = 0x200, scoped, tag = 'output window, operand 0, single buffered']
    #allocation5 [shape = 's32[2]{0}', space=sflag, size = 0x8, scoped, tag = 'scoped memory for tpu_custom_call.1']
    %11 = vsyncpa [#allocation5], 0
    loop: start=0, step=1, limit=4
    $region2: #{tpu_custom_call.1} parent=1 // loop_pre_header
      _
    $region3: #{tpu_custom_call.1} parent=1 // loop_header
      %s13 = sphi 0, %s17
      %p14 = scmp.ge.s32.totalorder %s13, 4
      %s23 = sphi 0, %s25
      %s26 = sphi 0, %s23
      %s27 = sphi 0, %s26
      %s43 = sphi 0, %s27
      %s49 = sphi 0, %s51
      %s52 = sphi 0, %s49
      %s53 = sphi 0, %s52
      %s69 = sphi 0, %s53
      %s73 = sphi 0, %s73
      %s75 = sphi 0, %s73
      %s76 = sphi 0, %s75
      %s90 = sphi 0, %s76
      %s94 = sphi 0, %s94
      %s96 = sphi 0, %s94
      %s97 = sphi 0, %s96
      %s111 = sphi 0, %s97
      %s115 = sphi 0, %s115
      %s117 = sphi 0, %s115
      %s118 = sphi 0, %s117
      %s132 = sphi 0, %s118
      %s136 = sphi 0, %s136
      %s138 = sphi 0, %s136
      %s139 = sphi 0, %s138
      %s153 = sphi 0, %s139
      %s157 = sphi 0, %s157
      %s159 = sphi 0, %s157
      %s160 = sphi 0, %s159
      %s174 = sphi 0, %s160
    $region4: #{tpu_custom_call.1} parent=1 // loop_header_branch
      %16 = sbr.rel (%p14) target = $region8
    $region5: #{tpu_custom_call.1} parent=1 // loop_body
      %s18 = ssub.s32 %s13, 1
      %s19 = ssub.s32 %s13, 2
      %s20 = sadd.s32 %s13, 1
      %s21 = ssub.s32 %s13, %s20
      %p22 = scmp.eq.s32.totalorder %s21, 0
      %s24 = sadd.s32 %s23, 1
      %s25 = scalar_select %p22, %s23, %s24
      %p28 = pneg %p22
      %p29 = scmp.eq.s32.totalorder %s13, 1
      %p30 = por %p28, %p29
      %p31 = scmp.ne.s32.totalorder %s23, %s26
      %p32 = scmp.eq.s32.totalorder %s13, 0
      %p33 = por %p31, %p32
      %p34 = scmp.ne.s32.totalorder %s23, %s26
      %p35 = scmp.eq.s32.totalorder %s18, 1
      %p36 = por %p34, %p35
      %p37 = scmp.ne.s32.totalorder %s26, %s27
      %p38 = scmp.eq.s32.totalorder %s18, 0
      %p39 = por %p37, %p38
      %p40 = scmp.ne.s32.totalorder %s26, %s27
      %p41 = scmp.eq.s32.totalorder %s19, 1
      %p42 = por %p40, %p41
      %p44 = scmp.ne.s32.totalorder %s27, %s43
      %p45 = scmp.eq.s32.totalorder %s19, 0
      %p46 = por %p44, %p45
      %s47 = ssub.s32 %s13, %s20
      %p48 = scmp.eq.s32.totalorder %s47, 0
      %s50 = sadd.s32 %s49, 1
      %s51 = scalar_select %p48, %s49, %s50
      %p54 = pneg %p48
      %p55 = scmp.eq.s32.totalorder %s13, 1
      %p56 = por %p54, %p55
      %p57 = scmp.ne.s32.totalorder %s49, %s52
      %p58 = scmp.eq.s32.totalorder %s13, 0
      %p59 = por %p57, %p58
      %p60 = scmp.ne.s32.totalorder %s49, %s52
      %p61 = scmp.eq.s32.totalorder %s18, 1
      %p62 = por %p60, %p61
      %p63 = scmp.ne.s32.totalorder %s52, %s53
      %p64 = scmp.eq.s32.totalorder %s18, 0
      %p65 = por %p63, %p64
      %p66 = scmp.ne.s32.totalorder %s52, %s53
      %p67 = scmp.eq.s32.totalorder %s19, 1
      %p68 = por %p66, %p67
      %p70 = scmp.ne.s32.totalorder %s53, %s69
      %p71 = scmp.eq.s32.totalorder %s19, 0
      %p72 = por %p70, %p71
      %s74 = sadd.s32 %s73, 1
      %p77 = scmp.eq.s32.totalorder %s13, 1
      %p78 = scmp.ne.s32.totalorder %s73, %s75
      %p79 = scmp.eq.s32.totalorder %s13, 0
      %p80 = por %p78, %p79
      %p81 = scmp.ne.s32.totalorder %s73, %s75
      %p82 = scmp.eq.s32.totalorder %s18, 1
      %p83 = por %p81, %p82
      %p84 = scmp.ne.s32.totalorder %s75, %s76
      %p85 = scmp.eq.s32.totalorder %s18, 0
      %p86 = por %p84, %p85
      %p87 = scmp.ne.s32.totalorder %s75, %s76
      %p88 = scmp.eq.s32.totalorder %s19, 1
      %p89 = por %p87, %p88
      %p91 = scmp.ne.s32.totalorder %s76, %s90
      %p92 = scmp.eq.s32.totalorder %s19, 0
      %p93 = por %p91, %p92
      %s95 = sadd.s32 %s94, 1
      %p98 = scmp.eq.s32.totalorder %s13, 1
      %p99 = scmp.ne.s32.totalorder %s94, %s96
      %p100 = scmp.eq.s32.totalorder %s13, 0
      %p101 = por %p99, %p100
      %p102 = scmp.ne.s32.totalorder %s94, %s96
      %p103 = scmp.eq.s32.totalorder %s18, 1
      %p104 = por %p102, %p103
      %p105 = scmp.ne.s32.totalorder %s96, %s97
      %p106 = scmp.eq.s32.totalorder %s18, 0
      %p107 = por %p105, %p106
      %p108 = scmp.ne.s32.totalorder %s96, %s97
      %p109 = scmp.eq.s32.totalorder %s19, 1
      %p110 = por %p108, %p109
      %p112 = scmp.ne.s32.totalorder %s97, %s111
      %p113 = scmp.eq.s32.totalorder %s19, 0
      %p114 = por %p112, %p113
      %s116 = sadd.s32 %s115, 1
      %p119 = scmp.eq.s32.totalorder %s13, 1
      %p120 = scmp.ne.s32.totalorder %s115, %s117
      %p121 = scmp.eq.s32.totalorder %s13, 0
      %p122 = por %p120, %p121
      %p123 = scmp.ne.s32.totalorder %s115, %s117
      %p124 = scmp.eq.s32.totalorder %s18, 1
      %p125 = por %p123, %p124
      %p126 = scmp.ne.s32.totalorder %s117, %s118
      %p127 = scmp.eq.s32.totalorder %s18, 0
      %p128 = por %p126, %p127
      %p129 = scmp.ne.s32.totalorder %s117, %s118
      %p130 = scmp.eq.s32.totalorder %s19, 1
      %p131 = por %p129, %p130
      %p133 = scmp.ne.s32.totalorder %s118, %s132
      %p134 = scmp.eq.s32.totalorder %s19, 0
      %p135 = por %p133, %p134
      %s137 = sadd.s32 %s136, 1
      %p140 = scmp.eq.s32.totalorder %s13, 1
      %p141 = scmp.ne.s32.totalorder %s136, %s138
      %p142 = scmp.eq.s32.totalorder %s13, 0
      %p143 = por %p141, %p142
      %p144 = scmp.ne.s32.totalorder %s136, %s138
      %p145 = scmp.eq.s32.totalorder %s18, 1
      %p146 = por %p144, %p145
      %p147 = scmp.ne.s32.totalorder %s138, %s139
      %p148 = scmp.eq.s32.totalorder %s18, 0
      %p149 = por %p147, %p148
      %p150 = scmp.ne.s32.totalorder %s138, %s139
      %p151 = scmp.eq.s32.totalorder %s19, 1
      %p152 = por %p150, %p151
      %p154 = scmp.ne.s32.totalorder %s139, %s153
      %p155 = scmp.eq.s32.totalorder %s19, 0
      %p156 = por %p154, %p155
      %s158 = sadd.s32 %s157, 1
      %p161 = scmp.eq.s32.totalorder %s13, 1
      %p162 = scmp.ne.s32.totalorder %s157, %s159
      %p163 = scmp.eq.s32.totalorder %s13, 0
      %p164 = por %p162, %p163
      %p165 = scmp.ne.s32.totalorder %s157, %s159
      %p166 = scmp.eq.s32.totalorder %s18, 1
      %p167 = por %p165, %p166
      %p168 = scmp.ne.s32.totalorder %s159, %s160
      %p169 = scmp.eq.s32.totalorder %s18, 0
      %p170 = por %p168, %p169
      %p171 = scmp.ne.s32.totalorder %s159, %s160
      %p172 = scmp.eq.s32.totalorder %s19, 1
      %p173 = por %p171, %p172
      %p175 = scmp.ne.s32.totalorder %s160, %s174
      %p176 = scmp.eq.s32.totalorder %s19, 0
      %p177 = por %p175, %p176
      %p178 = scmp.le.s32.totalorder 1, %s13
      %p179 = scmp.lt.s32.totalorder %s13, 3
      %p180 = pnand %p178, %p179
      %p181 = pneg %p180
      // Predicated region
      $region9: #{tpu_custom_call.1} parent=5 // pred_check
        _
      $region10: #{tpu_custom_call.1} parent=5 // pred_check_branch
        %183 = sbr.rel (%p180) target = $region12
      $region11: #{tpu_custom_call.1} parent=5 // pred_region
        %s184 = ssub.s32 %s13, 1
        // Predicated region
        $region13: #{tpu_custom_call.1} parent=11 // pred_check
          %p185 = pneg %p86
        $region14: #{tpu_custom_call.1} parent=11 // pred_check_branch
          %187 = sbr.rel (%p185) target = $region16
        $region15: #{tpu_custom_call.1} parent=11 // pred_region
          _
        $region16: #{tpu_custom_call.1} parent=11 // pred_fallthru
          _
        // Predicated region
        $region17: #{tpu_custom_call.1} parent=11 // pred_check
          %p188 = pneg %p107
        $region18: #{tpu_custom_call.1} parent=11 // pred_check_branch
          %190 = sbr.rel (%p188) target = $region20
        $region19: #{tpu_custom_call.1} parent=11 // pred_region
          _
        $region20: #{tpu_custom_call.1} parent=11 // pred_fallthru
          _
        // Predicated region
        $region21: #{tpu_custom_call.1} parent=11 // pred_check
          %p191 = pneg %p128
        $region22: #{tpu_custom_call.1} parent=11 // pred_check_branch
          %193 = sbr.rel (%p191) target = $region24
        $region23: #{tpu_custom_call.1} parent=11 // pred_region
          _
        $region24: #{tpu_custom_call.1} parent=11 // pred_fallthru
          _
        // Predicated region
        $region25: #{tpu_custom_call.1} parent=11 // pred_check
          %p194 = pneg %p149
        $region26: #{tpu_custom_call.1} parent=11 // pred_check_branch
          %196 = sbr.rel (%p194) target = $region28
        $region27: #{tpu_custom_call.1} parent=11 // pred_region
          _
        $region28: #{tpu_custom_call.1} parent=11 // pred_fallthru
          _
      $region12: #{tpu_custom_call.1} parent=5 // pred_fallthru
        _
      %p197 = scmp.lt.s32.totalorder %s13, 2
      // Predicated region
      $region29: #{tpu_custom_call.1} parent=5 // pred_check
        %p198 = pneg %p197
      $region30: #{tpu_custom_call.1} parent=5 // pred_check_branch
        %200 = sbr.rel (%p198) target = $region32
      $region31: #{tpu_custom_call.1} parent=5 // pred_region
        // Predicated region
        $region33: #{tpu_custom_call.1} parent=31 // pred_check
          %p201 = pneg %p33
        $region34: #{tpu_custom_call.1} parent=31 // pred_check_branch
          %203 = sbr.rel (%p201) target = $region36
        $region35: #{tpu_custom_call.1} parent=31 // pred_region
          %s204 = sand.u32 %s23, 1
          %s205 = sand.u32 %s23, 1
          %s206 = smul.addr %s205, 4
          %s207 = scalar_lea.vmem [#allocation2], %s206
          %s208 = smul.addr %s13, 2
          %s209 = scalar_lea.vmem %s0, %s208
          // Predicated region
          $region37: #{tpu_custom_call.1} parent=35 // pred_check
            _
          $region38: #{tpu_custom_call.1} parent=35 // pred_check_branch
            %211 = sbr.rel (0) target = $region40
          $region39: #{tpu_custom_call.1} parent=35 // pred_region
            // Predicated region
            $region41: #{tpu_custom_call.1} parent=39 // pred_check
              _
            $region42: #{tpu_custom_call.1} parent=39 // pred_check_branch
              %213 = sbr.rel target = $region44
            $region43: #{tpu_custom_call.1} parent=39 // pred_region
              // Predicated region
              $region56: #{tpu_custom_call.1} parent=43 // pred_check
                _
              $region57: #{tpu_custom_call.1} parent=43 // pred_check_branch
                %231 = sbr.rel (0) target = $region59
              $region58: #{tpu_custom_call.1} parent=43 // pred_region
                %s233 = ssub.s32 4, 1
                loop: start=0, step=1, limit=1
                $region60: #{tpu_custom_call.1} parent=58 // loop_pre_header
                  _
                $region61: #{tpu_custom_call.1} parent=58 // loop_header
                  %s235 = sphi 0, %s239
                  %p236 = scmp.ge.s32.totalorder %s235, 1
                  %s240 = sphi %s209, %s209
                  %s241 = sphi %s207, %s207
                $region62: #{tpu_custom_call.1} parent=58 // loop_header_branch
                  %238 = sbr.rel (%p236) target = $region66
                $region63: #{tpu_custom_call.1} parent=58 // loop_body
                  %v242 = vld [vmem:[%s240] sm:%s233]
                  %243 = vst [vmem:[%s241] sm:%s233] %v242
                  %v244 = vld [vmem:[%s240 + $0x4] sm:%s233]
                  %245 = vst [vmem:[%s241 + $0x2] sm:%s233] %v244
                $region64: #{tpu_custom_call.1} parent=58 // loop_footer
                  %s239 = sadd.s32 1, %s235
                $region65: #{tpu_custom_call.1} parent=58 // loop_footer_branch
                  %234 = sbr.rel target = $region61
                $region66: #{tpu_custom_call.1} parent=58 // loop_exit
                  _
              $region59: #{tpu_custom_call.1} parent=43 // pred_fallthru
                _
            $region44: #{tpu_custom_call.1} parent=39 // pred_fallthru
              _
            // Predicated region
            $region45: #{tpu_custom_call.1} parent=39 // pred_check
              _
            $region46: #{tpu_custom_call.1} parent=39 // pred_check_branch
              %215 = sbr.rel (0) target = $region48
            $region47: #{tpu_custom_call.1} parent=39 // pred_region
              %s217 = ssub.s32 4, 1
              loop: start=0, step=1, limit=1
              $region49: #{tpu_custom_call.1} parent=47 // loop_pre_header
                _
              $region50: #{tpu_custom_call.1} parent=47 // loop_header
                %s219 = sphi 0, %s223
                %p220 = scmp.ge.s32.totalorder %s219, 1
                %s224 = sphi %s209, %s209
                %s225 = sphi %s207, %s207
              $region51: #{tpu_custom_call.1} parent=47 // loop_header_branch
                %222 = sbr.rel (%p220) target = $region55
              $region52: #{tpu_custom_call.1} parent=47 // loop_body
                %v226 = vld [vmem:[%s224] sm:%s217]
                %227 = vst [vmem:[%s225] sm:%s217] %v226
                %v228 = vld [vmem:[%s224 + $0x4] sm:%s217]
                %229 = vst [vmem:[%s225 + $0x2] sm:%s217] %v228
              $region53: #{tpu_custom_call.1} parent=47 // loop_footer
                %s223 = sadd.s32 1, %s219
              $region54: #{tpu_custom_call.1} parent=47 // loop_footer_branch
                %218 = sbr.rel target = $region50
              $region55: #{tpu_custom_call.1} parent=47 // loop_exit
                _
            $region48: #{tpu_custom_call.1} parent=39 // pred_fallthru
              _
          $region40: #{tpu_custom_call.1} parent=35 // pred_fallthru
            _
          %246 = vnop
        $region36: #{tpu_custom_call.1} parent=31 // pred_fallthru
          _
        // Predicated region
        $region67: #{tpu_custom_call.1} parent=31 // pred_check
          %p247 = pneg %p59
        $region68: #{tpu_custom_call.1} parent=31 // pred_check_branch
          %249 = sbr.rel (%p247) target = $region70
        $region69: #{tpu_custom_call.1} parent=31 // pred_region
          %s250 = sand.u32 %s49, 1
          %s251 = sand.u32 %s49, 1
          %s252 = smul.addr %s251, 4
          %s253 = scalar_lea.vmem [#allocation3], %s252
          %s254 = smul.addr %s13, 2
          %s255 = scalar_lea.vmem %s1, %s254
          // Predicated region
          $region71: #{tpu_custom_call.1} parent=69 // pred_check
            _
          $region72: #{tpu_custom_call.1} parent=69 // pred_check_branch
            %257 = sbr.rel (0) target = $region74
          $region73: #{tpu_custom_call.1} parent=69 // pred_region
            // Predicated region
            $region75: #{tpu_custom_call.1} parent=73 // pred_check
              _
            $region76: #{tpu_custom_call.1} parent=73 // pred_check_branch
              %259 = sbr.rel target = $region78
            $region77: #{tpu_custom_call.1} parent=73 // pred_region
              // Predicated region
              $region90: #{tpu_custom_call.1} parent=77 // pred_check
                _
              $region91: #{tpu_custom_call.1} parent=77 // pred_check_branch
                %277 = sbr.rel (0) target = $region93
              $region92: #{tpu_custom_call.1} parent=77 // pred_region
                %s279 = ssub.s32 4, 1
                loop: start=0, step=1, limit=1
                $region94: #{tpu_custom_call.1} parent=92 // loop_pre_header
                  _
                $region95: #{tpu_custom_call.1} parent=92 // loop_header
                  %s281 = sphi 0, %s285
                  %p282 = scmp.ge.s32.totalorder %s281, 1
                  %s286 = sphi %s255, %s255
                  %s287 = sphi %s253, %s253
                $region96: #{tpu_custom_call.1} parent=92 // loop_header_branch
                  %284 = sbr.rel (%p282) target = $region100
                $region97: #{tpu_custom_call.1} parent=92 // loop_body
                  %v288 = vld [vmem:[%s286] sm:%s279]
                  %289 = vst [vmem:[%s287] sm:%s279] %v288
                  %v290 = vld [vmem:[%s286 + $0x4] sm:%s279]
                  %291 = vst [vmem:[%s287 + $0x2] sm:%s279] %v290
                $region98: #{tpu_custom_call.1} parent=92 // loop_footer
                  %s285 = sadd.s32 1, %s281
                $region99: #{tpu_custom_call.1} parent=92 // loop_footer_branch
                  %280 = sbr.rel target = $region95
                $region100: #{tpu_custom_call.1} parent=92 // loop_exit
                  _
              $region93: #{tpu_custom_call.1} parent=77 // pred_fallthru
                _
            $region78: #{tpu_custom_call.1} parent=73 // pred_fallthru
              _
            // Predicated region
            $region79: #{tpu_custom_call.1} parent=73 // pred_check
              _
            $region80: #{tpu_custom_call.1} parent=73 // pred_check_branch
              %261 = sbr.rel (0) target = $region82
            $region81: #{tpu_custom_call.1} parent=73 // pred_region
              %s263 = ssub.s32 4, 1
              loop: start=0, step=1, limit=1
              $region83: #{tpu_custom_call.1} parent=81 // loop_pre_header
                _
              $region84: #{tpu_custom_call.1} parent=81 // loop_header
                %s265 = sphi 0, %s269
                %p266 = scmp.ge.s32.totalorder %s265, 1
                %s270 = sphi %s255, %s255
                %s271 = sphi %s253, %s253
              $region85: #{tpu_custom_call.1} parent=81 // loop_header_branch
                %268 = sbr.rel (%p266) target = $region89
              $region86: #{tpu_custom_call.1} parent=81 // loop_body
                %v272 = vld [vmem:[%s270] sm:%s263]
                %273 = vst [vmem:[%s271] sm:%s263] %v272
                %v274 = vld [vmem:[%s270 + $0x4] sm:%s263]
                %275 = vst [vmem:[%s271 + $0x2] sm:%s263] %v274
              $region87: #{tpu_custom_call.1} parent=81 // loop_footer
                %s269 = sadd.s32 1, %s265
              $region88: #{tpu_custom_call.1} parent=81 // loop_footer_branch
                %264 = sbr.rel target = $region84
              $region89: #{tpu_custom_call.1} parent=81 // loop_exit
                _
            $region82: #{tpu_custom_call.1} parent=73 // pred_fallthru
              _
          $region74: #{tpu_custom_call.1} parent=69 // pred_fallthru
            _
          %292 = vnop
        $region70: #{tpu_custom_call.1} parent=31 // pred_fallthru
          _
      $region32: #{tpu_custom_call.1} parent=5 // pred_fallthru
        _
      %p293 = scmp.le.s32.totalorder 1, %s13
      %p294 = scmp.lt.s32.totalorder %s13, 3
      %p295 = pnand %p293, %p294
      %p296 = pneg %p295
      // Predicated region
      $region101: #{tpu_custom_call.1} parent=5 // pred_check
        _
      $region102: #{tpu_custom_call.1} parent=5 // pred_check_branch
        %298 = sbr.rel (%p295) target = $region104
      $region103: #{tpu_custom_call.1} parent=5 // pred_region
        %s299 = ssub.s32 %s13, 1
        %s300 = sand.u32 %s26, 1
        %s301 = sand.u32 %s26, 1
        %s302 = smul.addr %s301, 4
        %s303 = scalar_lea.vmem [#allocation2], %s302
        // Predicated region
        $region105: #{tpu_custom_call.1} parent=103 // pred_check
          %p304 = pneg %p39
        $region106: #{tpu_custom_call.1} parent=103 // pred_check_branch
          %306 = sbr.rel (%p304) target = $region108
        $region107: #{tpu_custom_call.1} parent=103 // pred_region
          _
        $region108: #{tpu_custom_call.1} parent=103 // pred_fallthru
          _
        %s307 = sand.u32 %s52, 1
        %s308 = sand.u32 %s52, 1
        %s309 = smul.addr %s308, 4
        %s310 = scalar_lea.vmem [#allocation3], %s309
        // Predicated region
        $region109: #{tpu_custom_call.1} parent=103 // pred_check
          %p311 = pneg %p65
        $region110: #{tpu_custom_call.1} parent=103 // pred_check_branch
          %313 = sbr.rel (%p311) target = $region112
        $region111: #{tpu_custom_call.1} parent=103 // pred_region
          _
        $region112: #{tpu_custom_call.1} parent=103 // pred_fallthru
          _
        %s314 = sand.u32 %s26, 1
        %s315 = sand.u32 %s26, 1
        %s316 = smul.addr %s315, 4
        %s317 = scalar_lea.vmem [#allocation2], %s316
        %p318 = pneg %p39
        %p319 = pneg %p36
        %s320 = sand.u32 %s52, 1
        %s321 = sand.u32 %s52, 1
        %s322 = smul.addr %s321, 4
        %s323 = scalar_lea.vmem [#allocation3], %s322
        %p324 = pneg %p65
        %p325 = pneg %p62
        %p326 = pneg %p86
        %p327 = pneg %p83
        %p328 = pneg %p107
        %p329 = pneg %p104
        %p330 = pneg %p128
        %p331 = pneg %p125
        %p332 = pneg %p149
        %p333 = pneg %p146
        %p334 = pneg %p170
        %p335 = pneg %p167
        %v336 = vld [vmem:[%s303] sm:$0x3]
        %v337 = vld [vmem:[%s303 + $0x2] sm:$0x3]
        %v338 = vunpack.c.l.bf16 %v336
        %v339 = vunpack.c.l.bf16 %v337
        %v340 = vld [vmem:[%s310] sm:$0x3]
        %v341 = vld [vmem:[%s310 + $0x2] sm:$0x3]
        %v342 = vunpack.c.l.bf16 %v340
        %v343 = vunpack.c.l.bf16 %v341
        %v344 = vlaneseq
        %v345 = vand.u32 %v344, 127
        %s346 = smul.u32 %s18, 128
        %v347 = vstv %s346
        %v348 = vadd.s32 %v345, %v347
        %vm349 = vcmp.lt.s32.totalorder %v348, 256
        %v350 = vsel %vm349, 1, 0
        %v351 = vcvt.s32.f32 %v350
        %v352 = vand.u32 2147483647, %v338
        %v353 = vand.u32 2147483647, %v339
        %v354 = vsub.f32 0.0, %v352
        %v355 = vsub.f32 0.0, %v353
        %v356 = vmul.f32 %v354, 1.442695
        %v357 = vpow.pop %v356
        %v358 = vmul.f32 %v355, 1.442695
        %v359 = vpow.pop %v358
        %v360 = vadd.f32 %v357, 1.0
        %v361 = vlog2.pop %v360
        %v362 = vmul.f32 %v361, 0.6931472
        %v363 = vmul.f32 -0.5, %v357
        %v364 = vadd.f32 %v363, 1.0
        %v365 = vmul.f32 %v364, %v357
        %v366 = vand.u32 2147483647, %v357
        %vm367 = vcmp.lt.f32.partialorder %v366, 0.0004427343
        %v368 = vsel %vm367, %v365, %v362
        %v369 = vadd.f32 %v359, 1.0
        %v370 = vlog2.pop %v369
        %v371 = vmul.f32 %v370, 0.6931472
        %v372 = vmul.f32 -0.5, %v359
        %v373 = vadd.f32 %v372, 1.0
        %v374 = vmul.f32 %v373, %v359
        %v375 = vand.u32 2147483647, %v359
        %vm376 = vcmp.lt.f32.partialorder %v375, 0.0004427343
        %v377 = vsel %vm376, %v374, %v371
        %v378 = vmin.f32 %v338, 0.0
        %v379 = vmin.f32 %v339, 0.0
        %v380 = vsub.f32 %v378, %v368
        %v381 = vsub.f32 %v379, %v377
        %v382 = vmax.f32 %v338, 0.0
        %v383 = vmax.f32 %v339, 0.0
        %v384 = vsub.f32 0.0, %v382
        %v385 = vsub.f32 0.0, %v383
        %v386 = vsub.f32 %v384, %v368
        %v387 = vsub.f32 %v385, %v377
        %v388 = vadd.f32 %v357, 1.0
        %v389 = vadd.f32 %v359, 1.0
        %v390 = vrcp.pop %v388
        %v391 = vmul.f32 1.0, %v390
        %v392 = vrcp.pop %v389
        %v393 = vmul.f32 1.0, %v392
        %vm394 = vcmp.ge.f32.partialorder %v338, 0.0
        %vm395 = vcmp.ge.f32.partialorder %v339, 0.0
        %v396 = vmul.f32 %v357, %v391
        %v397 = vmul.f32 %v359, %v393
        %v398 = vsel %vm394, %v391, %v396
        %v399 = vsel %vm395, %v393, %v397
        %v400 = vsub.f32 1.0, %v398
        %v401 = vsub.f32 1.0, %v399
        %vm402 = vcmp.eq.f32.partialorder %v342, 1.0
        %vm403 = vcmp.eq.f32.partialorder %v343, 1.0
        %v404 = vsel %vm402, 1, 0
        %v405 = vsel %vm403, 1, 0
        %v406 = vcvt.s32.f32 %v404
        %v407 = vcvt.s32.f32 %v405
        %v408 = vmul.f32 %v406, %v351
        %v409 = vmul.f32 %v407, %v351
        %v410 = vsub.f32 1.0, %v342
        %v411 = vsub.f32 1.0, %v343
        %v412 = vmul.f32 %v410, %v351
        %v413 = vmul.f32 %v411, %v351
        %v414 = vmul.f32 %v412, %v412
        %v415 = vmul.f32 %v413, %v413
        %v416 = vmul.f32 %v414, %v414
        %v417 = vmul.f32 %v415, %v415
        %v418 = vsub.f32 0.0, %v380
        %v419 = vsub.f32 0.0, %v381
        %v420 = vmul.f32 %v400, %v400
        %v421 = vmul.f32 %v401, %v401
        %v422 = vmul.f32 %v418, %v420
        %v423 = vmul.f32 %v419, %v421
        %v424 = vmul.f32 %v422, %v408
        %v425 = vmul.f32 %v423, %v409
        %v426 = vsub.f32 0.0, %v386
        %v427 = vsub.f32 0.0, %v387
        %v428 = vmul.f32 %v398, %v398
        %v429 = vmul.f32 %v399, %v399
        %v430 = vmul.f32 %v426, %v428
        %v431 = vmul.f32 %v427, %v429
        %v432 = vmul.f32 %v430, %v416
        %v433 = vmul.f32 %v431, %v417
        %v434 = vadd.f32 %v424, %v432
        %v435 = vadd.f32 %v425, %v433
        %vm436 = vcmask 1043456
        %v437 = vsel %vm436, %v434, 0.0
        %v438 = vsel %vm436, %v435, 0.0
        %v439 = vadd.f32 %v437, %v438
        %440 = vadd.xlane.f32.xlu0 %v439
        %v441 = vpop.xlane.xlu0 %440
        %v442 = vrot.slane %v441, 4
        %v443 = vadd.f32 %v441, %v442
        %v444 = vrot.slane %v443, 2
        %v445 = vadd.f32 %v443, %v444
        %v446 = vrot.slane %v445, 1
        %v447 = vadd.f32 %v445, %v446
        %s448 = vtos %v447
        %v449 = vsel %vm436, %v408, 0.0
        %v450 = vsel %vm436, %v409, 0.0
        %v451 = vadd.f32 %v449, %v450
        %452 = vadd.xlane.f32.xlu0 %v451
        %v453 = vpop.xlane.xlu0 %452
        %v454 = vrot.slane %v453, 4
        %v455 = vadd.f32 %v453, %v454
        %v456 = vrot.slane %v455, 2
        %v457 = vadd.f32 %v455, %v456
        %v458 = vrot.slane %v457, 1
        %v459 = vadd.f32 %v457, %v458
        %s460 = vtos %v459
        %p461 = scmp.eq.s32.totalorder %s18, 0
        // Predicated region
        $region113: #{tpu_custom_call.1} parent=103 // pred_check
          %p462 = pneg %p461
        $region114: #{tpu_custom_call.1} parent=103 // pred_check_branch
          %464 = sbr.rel (%p462) target = $region116
        $region115: #{tpu_custom_call.1} parent=103 // pred_region
          %v465 = vld [vmem:[%s2] sm:$0xf]
          %v466 = vld [vmem:[%s2 + $0x4] sm:$0xf]
          %v467 = vld [vmem:[%s3] sm:$0x3]
          %v468 = vlaneseq
          %v469 = vshrl.u32 %v468, 7
          %vm470 = vcmp.lt.s32.totalorder %v345, 16
          %v471 = vsel %vm470, 1, 0
          %v472 = vcvt.s32.f32 %v471
          %v474 = vunpack.c.l.s4 1966171168
          %v475 = vunpack.c.0.s8 %v474
          %v476 = vlaneseq
          %v477 = vshrl.u32 %v476, 7
          %v478 = vsub.s32 %v475, %v477
          %v479 = vrot.slane %v467, %v478
          %v480 = vcombine.high %v479, %v479
          %v482 = vunpack.c.l.s4 1966171168
          %v483 = vunpack.c.0.s8 %v482
          %v484 = vlaneseq
          %v485 = vshrl.u32 %v484, 7
          %v486 = vsub.s32 %v483, %v485
          %v487 = vrot.slane %v479, %v486
          %v489 = vunpack.c.l.s4 1966171168
          %v490 = vunpack.c.0.s8 %v489
          %v491 = vlaneseq
          %v492 = vshrl.u32 %v491, 7
          %v493 = vsub.s32 %v490, %v492
          %v494 = vrot.slane %v480, %v493
          %v495 = vlaneseq
          %v496 = vshrl.u32 %v495, 7
          %v497 = vsub.s32 0, %v496
          %v498 = vrot.slane %v487, %v497
          %v499 = vlaneseq
          %v500 = vshrl.u32 %v499, 7
          %v501 = vsub.s32 0, %v500
          %v502 = vrot.slane %v494, %v501
          %vm503 = vcmp.eq.s32.totalorder %v498, %v469
          %vm504 = vcmp.eq.s32.totalorder %v502, %v469
          %v505 = vsel %vm503, 1, 0
          %v506 = vsel %vm504, 1, 0
          %v507 = vcvt.s32.f32 %v505
          %v508 = vcvt.s32.f32 %v506
          %v509 = vand.u32 2147483647, %v465
          %v510 = vand.u32 2147483647, %v466
          %v511 = vsub.f32 0.0, %v509
          %v512 = vsub.f32 0.0, %v510
          %v513 = vmul.f32 %v511, 1.442695
          %v514 = vpow.pop %v513
          %v515 = vmul.f32 %v512, 1.442695
          %v516 = vpow.pop %v515
          %v517 = vadd.f32 %v514, 1.0
          %v518 = vlog2.pop %v517
          %v519 = vmul.f32 %v518, 0.6931472
          %v520 = vmul.f32 -0.5, %v514
          %v521 = vadd.f32 %v520, 1.0
          %v522 = vmul.f32 %v521, %v514
          %v523 = vand.u32 2147483647, %v514
          %vm524 = vcmp.lt.f32.partialorder %v523, 0.0004427343
          %v525 = vsel %vm524, %v522, %v519
          %v526 = vadd.f32 %v516, 1.0
          %v527 = vlog2.pop %v526
          %v528 = vmul.f32 %v527, 0.6931472
          %v529 = vmul.f32 -0.5, %v516
          %v530 = vadd.f32 %v529, 1.0
          %v531 = vmul.f32 %v530, %v516
          %v532 = vand.u32 2147483647, %v516
          %vm533 = vcmp.lt.f32.partialorder %v532, 0.0004427343
          %v534 = vsel %vm533, %v531, %v528
          %v535 = vmax.f32 %v465, 0.0
          %v536 = vmax.f32 %v466, 0.0
          %v537 = vmul.f32 %v465, %v507
          %v538 = vmul.f32 %v466, %v508
          %v539 = vsub.f32 %v535, %v537
          %v540 = vsub.f32 %v536, %v538
          %v541 = vadd.f32 %v539, %v525
          %v542 = vadd.f32 %v540, %v534
          %v543 = vadd.f32 %v514, 1.0
          %v544 = vadd.f32 %v516, 1.0
          %v545 = vrcp.pop %v543
          %v546 = vmul.f32 1.0, %v545
          %v547 = vrcp.pop %v544
          %v548 = vmul.f32 1.0, %v547
          %vm549 = vcmp.ge.f32.partialorder %v465, 0.0
          %vm550 = vcmp.ge.f32.partialorder %v466, 0.0
          %v551 = vmul.f32 %v514, %v546
          %v552 = vmul.f32 %v516, %v548
          %v553 = vsel %vm549, %v546, %v551
          %v554 = vsel %vm550, %v548, %v552
          %v555 = vsub.f32 1.0, %v553
          %v556 = vsub.f32 1.0, %v554
          %v557 = vmul.f32 %v555, %v507
          %v558 = vmul.f32 %v556, %v508
          %v559 = vsub.f32 1.0, %v507
          %v560 = vsub.f32 1.0, %v508
          %v561 = vmul.f32 %v553, %v559
          %v562 = vmul.f32 %v554, %v560
          %v563 = vadd.f32 %v557, %v561
          %v564 = vadd.f32 %v558, %v562
          %v565 = vmul.f32 %v507, 0.25
          %v566 = vmul.f32 %v508, 0.25
          %v567 = vmul.f32 %v559, 0.75
          %v568 = vmul.f32 %v560, 0.75
          %v569 = vadd.f32 %v565, %v567
          %v570 = vadd.f32 %v566, %v568
          %v571 = vmul.f32 %v563, %v563
          %v572 = vmul.f32 %v564, %v564
          %v573 = vmul.f32 %v569, %v571
          %v574 = vmul.f32 %v570, %v572
          %v575 = vmul.f32 %v541, %v573
          %v576 = vmul.f32 %v542, %v574
          %v577 = vmul.f32 %v575, %v472
          %v578 = vmul.f32 %v576, %v472
          %v579 = vsel %vm436, %v577, 0.0
          %v580 = vsel %vm436, %v578, 0.0
          %v581 = vadd.f32 %v579, %v580
          %582 = vadd.xlane.f32.xlu0 %v581
          %v583 = vpop.xlane.xlu0 %582
          %v584 = vrot.slane %v583, 4
          %v585 = vadd.f32 %v583, %v584
          %v586 = vrot.slane %v585, 2
          %v587 = vadd.f32 %v585, %v586
          %v588 = vrot.slane %v587, 1
          %v589 = vadd.f32 %v587, %v588
          %s590 = vtos %v589
          %vm591 = vcmp.lt.s32.totalorder %v467, 4
          %vm592 = vmand %vm591, %vm470
          %v593 = vsel %vm592, 1, 0
          %v594 = vcvt.s32.f32 %v593
          %v595 = vld [vmem:[%s4] sm:$0x3f]
          %v596 = vld [vmem:[%s4 + $0x8] sm:$0x3f]
          %v597 = vld [vmem:[%s5] sm:$0x3f]
          %v598 = vld [vmem:[%s5 + $0x8] sm:$0x3f]
          %v599 = vsub.f32 %v595, %v597
          %v600 = vsub.f32 %v596, %v598
          %v601 = vand.u32 2147483647, %v599
          %v602 = vand.u32 2147483647, %v600
          %v605 = vunpack.c.l.s4 1966171168
          %v606 = vunpack.c.0.s8 %v605
          %v607 = vlaneseq
          %v608 = vshrl.u32 %v607, 7
          %v609 = vsub.s32 %v606, %v608
          %v610 = vrot.slane %v594, %v609
          %v611 = vcombine.high %v610, %v610
          %v613 = vunpack.c.l.s4 1966171168
          %v614 = vunpack.c.0.s8 %v613
          %v615 = vlaneseq
          %v616 = vshrl.u32 %v615, 7
          %v617 = vsub.s32 %v614, %v616
          %v618 = vrot.slane %v610, %v617
          %v620 = vunpack.c.l.s4 1966171168
          %v621 = vunpack.c.0.s8 %v620
          %v622 = vlaneseq
          %v623 = vshrl.u32 %v622, 7
          %v624 = vsub.s32 %v621, %v623
          %v625 = vrot.slane %v611, %v624
          %v626 = vlaneseq
          %v627 = vshrl.u32 %v626, 7
          %v628 = vsub.s32 0, %v627
          %v629 = vrot.slane %v618, %v628
          %v630 = vlaneseq
          %v631 = vshrl.u32 %v630, 7
          %v632 = vsub.s32 0, %v631
          %v633 = vrot.slane %v625, %v632
          %v636 = vmul.f32 %v601, %v629
          %v637 = vmul.f32 %v602, %v633
          %vm638 = vcmp.lt.s32.totalorder %v469, 2
          %v639 = vsel %vm638, %v636, 0.0
          %v640 = vsel %vm638, %v637, 0.0
          %vm641 = vcmask 1045504
          %v642 = vsel %vm641, %v639, 0.0
          %v643 = vsel %vm641, %v640, 0.0
          %v644 = vadd.f32 %v642, %v643
          %645 = vadd.xlane.f32.xlu0 %v644
          %v646 = vpop.xlane.xlu0 %645
          %v647 = vrot.slane %v646, 4
          %v648 = vadd.f32 %v646, %v647
          %v649 = vrot.slane %v648, 2
          %v650 = vadd.f32 %v648, %v649
          %v651 = vrot.slane %v650, 1
          %v652 = vadd.f32 %v650, %v651
          %s653 = vtos %v652
          %vm654 = vcmp.ge.s32.totalorder %v469, 2
          %vm655 = vcmp.lt.s32.totalorder %v469, 4
          %vm656 = vmand %vm654, %vm655
          %v657 = vsel %vm656, %v636, 0.0
          %v658 = vsel %vm656, %v637, 0.0
          %v659 = vsel %vm641, %v657, 0.0
          %v660 = vsel %vm641, %v658, 0.0
          %v661 = vadd.f32 %v659, %v660
          %662 = vadd.xlane.f32.xlu0 %v661
          %v663 = vpop.xlane.xlu0 %662
          %v664 = vrot.slane %v663, 4
          %v665 = vadd.f32 %v663, %v664
          %v666 = vrot.slane %v665, 2
          %v667 = vadd.f32 %v665, %v666
          %v668 = vrot.slane %v667, 1
          %v669 = vadd.f32 %v667, %v668
          %s670 = vtos %v669
          %vm671 = vcmp.ge.s32.totalorder %v469, 4
          %v672 = vsel %vm671, %v636, 0.0
          %v673 = vsel %vm671, %v637, 0.0
          %v674 = vsel %vm641, %v672, 0.0
          %v675 = vsel %vm641, %v673, 0.0
          %v676 = vadd.f32 %v674, %v675
          %677 = vadd.xlane.f32.xlu0 %v676
          %v678 = vpop.xlane.xlu0 %677
          %v679 = vrot.slane %v678, 4
          %v680 = vadd.f32 %v678, %v679
          %v681 = vrot.slane %v680, 2
          %v682 = vadd.f32 %v680, %v681
          %v683 = vrot.slane %v682, 1
          %v684 = vadd.f32 %v682, %v683
          %s685 = vtos %v684
          %s686 = scalar_lea.smem [#allocation4], 0
          %687 = sst [smem:[%s686]] %s448
          %s688 = scalar_lea.smem [#allocation4], 1
          %689 = sst [smem:[%s688]] %s460
          %s690 = scalar_lea.smem [#allocation4], 2
          %691 = sst [smem:[%s690]] %s590
          %s692 = scalar_lea.smem [#allocation4], 3
          %693 = sst [smem:[%s692]] %s653
          %s694 = scalar_lea.smem [#allocation4], 4
          %695 = sst [smem:[%s694]] %s670
          %s696 = scalar_lea.smem [#allocation4], 5
          %697 = sst [smem:[%s696]] %s685
          %vm698 = vcmask 1041408
          %v699 = vsel %vm698, %v594, 0.0
          %700 = vadd.xlane.f32.xlu0 %v699
          %v701 = vpop.xlane.xlu0 %700
          %v702 = vrot.slane %v701, 4
          %v703 = vadd.f32 %v701, %v702
          %v704 = vrot.slane %v703, 2
          %v705 = vadd.f32 %v703, %v704
          %v706 = vrot.slane %v705, 1
          %v707 = vadd.f32 %v705, %v706
          %s708 = vtos %v707
          %s709 = scalar_lea.smem [#allocation4], 6
          %710 = sst [smem:[%s709]] %s708
          %s711 = scalar_lea.smem [#allocation4], 7
          %712 = sst [smem:[%s711]] 0.0
        $region116: #{tpu_custom_call.1} parent=103 // pred_fallthru
          _
        %p713 = scmp.gt.s32.totalorder %s18, 0
        // Predicated region
        $region117: #{tpu_custom_call.1} parent=103 // pred_check
          %p714 = pneg %p713
        $region118: #{tpu_custom_call.1} parent=103 // pred_check_branch
          %716 = sbr.rel (%p714) target = $region120
        $region119: #{tpu_custom_call.1} parent=103 // pred_region
          %s717 = sld [smem:[#allocation4]]
          %s718 = sadd.f32 %s717, %s448
          %s719 = scalar_lea.smem [#allocation4], 0
          %720 = sst [smem:[%s719]] %s718
          %s721 = sld [smem:[#allocation4 + $0x1]]
          %s722 = sadd.f32 %s721, %s460
          %s723 = scalar_lea.smem [#allocation4], 1
          %724 = sst [smem:[%s723]] %s722
        $region120: #{tpu_custom_call.1} parent=103 // pred_fallthru
          _
        // Predicated region
        $region121: #{tpu_custom_call.1} parent=103 // pred_check
          %p725 = pneg %p167
        $region122: #{tpu_custom_call.1} parent=103 // pred_check_branch
          %727 = sbr.rel (%p725) target = $region124
        $region123: #{tpu_custom_call.1} parent=103 // pred_region
          %s729 = ssub.s32 16, 16
          %730 = vsyncadd [#allocation5], %s729
          %733 = dma.smem_to_hbm [#allocation4], 16, %s6, [#allocation5]
        $region124: #{tpu_custom_call.1} parent=103 // pred_fallthru
          _
        // Predicated region
        $region125: #{tpu_custom_call.1} parent=103 // pred_check
          %p734 = pneg %p167
        $region126: #{tpu_custom_call.1} parent=103 // pred_check_branch
          %736 = sbr.rel (%p734) target = $region128
        $region127: #{tpu_custom_call.1} parent=103 // pred_region
          %737 = dma.done [#allocation5], 16
        $region128: #{tpu_custom_call.1} parent=103 // pred_fallthru
          _
        %738 = sfence
      $region104: #{tpu_custom_call.1} parent=5 // pred_fallthru
        _
      %p739 = scmp.le.s32.totalorder 2, %s13
      // Predicated region
      $region129: #{tpu_custom_call.1} parent=5 // pred_check
        %p740 = pneg %p739
      $region130: #{tpu_custom_call.1} parent=5 // pred_check_branch
        %742 = sbr.rel (%p740) target = $region132
      $region131: #{tpu_custom_call.1} parent=5 // pred_region
        %s743 = ssub.s32 %s13, 2
      $region132: #{tpu_custom_call.1} parent=5 // pred_fallthru
        _
    $region6: #{tpu_custom_call.1} parent=1 // loop_footer
      %s17 = sadd.s32 1, %s13
    $region7: #{tpu_custom_call.1} parent=1 // loop_footer_branch
      %12 = sbr.rel target = $region3
    $region8: #{tpu_custom_call.1} parent=1 // loop_exit
      _
    %744 = vsyncpa [#allocation5], 1
    %s745 = scalar_lea.sflag [#allocation5], 1
    %746 = vsyncpa %s745, 1

</llo_original>
